<compile_context>
chip_gen: v7x
topology: tpu7x:2x2x1
jax: 0.10.0
libtpu: 0.0.40
codegen_flags: <defaults>
</compile_context>

<pallas_src>
import jax
import jax.numpy as jnp
from jax.experimental import pallas as pl
from jax.experimental.pallas import tpu as pltpu

EPS = 1e-5


def residual_block_kernel(x_ref, lm_ref, rm_ref,
                          w1_ref, g1_ref, be1_ref,
                          w2_ref, g2_ref, be2_ref,
                          out_ref):
    N, C, L = x_ref.shape
    NL = N * L
    inv_m = 1.0 / float(NL)

    # (1, N*L) per-sample boundary masks (precomputed in the wrapper).
    lm = lm_ref[...]          # zero at every sample's l == 0     (kills x[l-1] wrap)
    rm = rm_ref[...]          # zero at every sample's l == L - 1 (kills x[l+1] wrap)

    w1 = w1_ref[...]          # (C, 3C): [W_left | W_center | W_right]
    w2 = w2_ref[...]
    g1, be1 = g1_ref[...], be1_ref[...]   # (C, 1)
    g2, be2 = g2_ref[...], be2_ref[...]

    # Build the (C, N*L) slab ONCE; reused as conv1 input and as the residual.
    xs = jnp.concatenate([x_ref[n].astype(jnp.float32) for n in range(N)], axis=1)

    def conv3(a, w):
        # kernel_size=3 / padding=1 conv on the whole slab: stack the three
        # lane-rolled copies along the contraction axis and do ONE matmul.
        # Conv bias omitted: it is cancelled by the training-mode BN mean.
        left = pltpu.roll(a, shift=1, axis=1) * lm         # x[l-1]
        right = pltpu.roll(a, shift=NL - 1, axis=1) * rm   # x[l+1]
        stacked = jnp.concatenate([left, a, right], axis=0)          # (3C, NL)
        return jnp.dot(w, stacked.astype(w.dtype),
                       preferred_element_type=jnp.float32)           # (C, NL)

    # ---------------- conv1 -> BN1 -> ReLU ----------------
    y1 = conv3(xs, w1)
    mean1 = jnp.sum(y1, axis=1, keepdims=True) * inv_m               # (C, 1)
    c1 = y1 - mean1                                                  # centered, reused
    var1 = jnp.sum(c1 * c1, axis=1, keepdims=True) * inv_m
    scale1 = g1 * jax.lax.rsqrt(var1 + EPS)                          # (C, 1), EUP
    h = jnp.maximum(c1 * scale1 + be1, 0.0)                          # affine + ReLU fused

    # ---------------- conv2 -> BN2 -> +residual -> ReLU ----------------
    y2 = conv3(h, w2)
    mean2 = jnp.sum(y2, axis=1, keepdims=True) * inv_m
    c2 = y2 - mean2
    var2 = jnp.sum(c2 * c2, axis=1, keepdims=True) * inv_m
    scale2 = g2 * jax.lax.rsqrt(var2 + EPS)
    res = jnp.maximum(c2 * scale2 + be2 + xs, 0.0)                   # (C, NL)

    # Lane-dense per-sample stores (each slice is a multiple of 128 lanes).
    for n in range(N):
        out_ref[n] = res[:, n * L:(n + 1) * L].astype(out_ref.dtype)


def residual_block(x_ncl, params):
    """x_ncl: (N, C, L) float32, PyTorch Conv1d layout in -> same layout out."""
    N, C, L = x_ncl.shape
    NL = N * L

    # Per-sample conv boundary masks, tiled once to (1, N*L) in the wrapper so
    # roll on the slab cannot leak activations across sample boundaries.
    pos = jnp.arange(NL, dtype=jnp.int32) % L
    lm = (pos != 0).astype(jnp.float32).reshape(1, NL)
    rm = (pos != L - 1).astype(jnp.float32).reshape(1, NL)

    # bf16 conv operands only pay off once the MXU is actually the bottleneck.
    conv_dtype = jnp.bfloat16 if C >= 64 else jnp.float32

    def stack_w(w):
        # Conv1d weight (C_out, C_in, 3) -> (C_out, 3*C_in) = [W_left|W_center|W_right],
        # matching the [left; center; right] activation stacking in the kernel.
        return jnp.concatenate([w[:, :, 0], w[:, :, 1], w[:, :, 2]],
                               axis=1).astype(conv_dtype)

    # Conv biases b1/b2 intentionally NOT passed: cancelled by training-mode BN.
    w1 = stack_w(params["w1"])
    w2 = stack_w(params["w2"])
    g1 = params["g1"].reshape(C, 1).astype(jnp.float32)
    be1 = params["be1"].reshape(C, 1).astype(jnp.float32)
    g2 = params["g2"].reshape(C, 1).astype(jnp.float32)
    be2 = params["be2"].reshape(C, 1).astype(jnp.float32)

    full = lambda shape: pl.BlockSpec(shape, lambda: (0,) * len(shape))

    # Generation-aware VMEM limit: never request the whole physical VMEM
    # (v7x has only 64 MiB per TensorCore; v5e/v6e have 128 MiB).
    act_bytes = N * C * L * 4
    try:
        vmem_cap = int(pltpu.get_tpu_info().vmem_capacity_bytes)
    except Exception:
        vmem_cap = 64 * 1024 * 1024
    vmem_limit = int(min(3 * vmem_cap // 4,
                         max(4 * 1024 * 1024, 16 * act_bytes)))

    cost = pl.CostEstimate(
        flops=12 * C * C * NL + 30 * C * NL,
        transcendentals=2 * C,
        bytes_accessed=2 * act_bytes + 2 * 3 * C * C * 4 + 8 * C * 4 + 2 * NL * 4,
    )

    return pl.pallas_call(
        residual_block_kernel,
        out_shape=jax.ShapeDtypeStruct((N, C, L), jnp.float32),
        in_specs=[
            full((N, C, L)),
            full((1, NL)), full((1, NL)),
            full((C, 3 * C)), full((C, 1)), full((C, 1)),
            full((C, 3 * C)), full((C, 1)), full((C, 1)),
        ],
        out_specs=full((N, C, L)),
        compiler_params=pltpu.CompilerParams(vmem_limit_bytes=vmem_limit),
        cost_estimate=cost,
    )(x_ncl, lm, rm, w1, g1, be1, w2, g2, be2)


# ---------------- pure-JAX reference (for verification) ----------------
def _conv1d_ref(x, w, b):
    y = jax.lax.conv_general_dilated(
        x, w, window_strides=(1,), padding=[(1, 1)],
        dimension_numbers=("NCH", "OIH", "NCH"))
    return y + b[None, :, None]


def _bn_ref(y, g, be):
    mean = jnp.mean(y, axis=(0, 2), keepdims=True)
    var = jnp.mean((y - mean) ** 2, axis=(0, 2), keepdims=True)
    return (y - mean) / jnp.sqrt(var + EPS) * g[None, :, None] + be[None, :, None]


def residual_block_ref(x, p):
    h = jax.nn.relu(_bn_ref(_conv1d_ref(x, p["w1"], p["b1"]), p["g1"], p["be1"]))
    out = _bn_ref(_conv1d_ref(h, p["w2"], p["b2"]), p["g2"], p["be2"])
    return jax.nn.relu(out + x)


if __name__ == "__main__":
    N, C, L = 2, 8, 128  # batch, channels, sequence length

    key = jax.random.PRNGKey(0)
    kx, k1, k2, k3, k4, k5, k6, k7, k8 = jax.random.split(key, 9)

    x = jax.random.normal(kx, (N, C, L), jnp.float32)

    params = {
        # Conv1d weights in PyTorch layout (C_out, C_in, K)
        "w1": jax.random.normal(k1, (C, C, 3), jnp.float32) * 0.1,
        "b1": jax.random.normal(k2, (C,), jnp.float32) * 0.1,
        "w2": jax.random.normal(k3, (C, C, 3), jnp.float32) * 0.1,
        "b2": jax.random.normal(k4, (C,), jnp.float32) * 0.1,
        # BatchNorm affine params (non-trivial to exercise scale/shift)
        "g1": 1.0 + 0.1 * jax.random.normal(k5, (C,), jnp.float32),
        "be1": 0.1 * jax.random.normal(k6, (C,), jnp.float32),
        "g2": 1.0 + 0.1 * jax.random.normal(k7, (C,), jnp.float32),
        "be2": 0.1 * jax.random.normal(k8, (C,), jnp.float32),
    }

    out = jax.block_until_ready(residual_block(x, params))
    ref = jax.block_until_ready(residual_block_ref(x, params))

    assert out.shape == x.shape and out.dtype == jnp.float32
    max_err = float(jnp.max(jnp.abs(out - ref)))
    assert max_err < 1e-3, f"mismatch vs reference: max abs err = {max_err}"

    print("KERNEL_OK")
</pallas_src>

<mosaic_0001>
module attributes {stable_mosaic.version = 11 : i64} {
  func.func @residual_block_kernel(%arg0: memref<2x8x128xf32, #tpu.memory_space<vmem>>, %arg1: memref<1x256xf32, #tpu.memory_space<vmem>>, %arg2: memref<1x256xf32, #tpu.memory_space<vmem>>, %arg3: memref<8x24xf32, #tpu.memory_space<vmem>>, %arg4: memref<8x1xf32, #tpu.memory_space<vmem>>, %arg5: memref<8x1xf32, #tpu.memory_space<vmem>>, %arg6: memref<8x24xf32, #tpu.memory_space<vmem>>, %arg7: memref<8x1xf32, #tpu.memory_space<vmem>>, %arg8: memref<8x1xf32, #tpu.memory_space<vmem>>, %arg9: memref<2x8x128xf32, #tpu.memory_space<vmem>>) attributes {dimension_semantics = [], scalar_prefetch = 0 : i64, scratch_operands = 0 : i64, tpu.core_type = #tpu.core_type<tc>} {
    %c0 = arith.constant 0 : index
    %c0_0 = arith.constant 0 : index
    %0 = vector.load %arg1[%c0, %c0_0] : memref<1x256xf32, #tpu.memory_space<vmem>>, vector<1x256xf32>
    %c0_1 = arith.constant 0 : index
    %c0_2 = arith.constant 0 : index
    %1 = vector.load %arg2[%c0_1, %c0_2] : memref<1x256xf32, #tpu.memory_space<vmem>>, vector<1x256xf32>
    %c0_3 = arith.constant 0 : index
    %c0_4 = arith.constant 0 : index
    %2 = vector.load %arg3[%c0_3, %c0_4] : memref<8x24xf32, #tpu.memory_space<vmem>>, vector<8x24xf32>
    %c0_5 = arith.constant 0 : index
    %c0_6 = arith.constant 0 : index
    %3 = vector.load %arg6[%c0_5, %c0_6] : memref<8x24xf32, #tpu.memory_space<vmem>>, vector<8x24xf32>
    %c0_7 = arith.constant 0 : index
    %c0_8 = arith.constant 0 : index
    %4 = vector.load %arg4[%c0_7, %c0_8] : memref<8x1xf32, #tpu.memory_space<vmem>>, vector<8x1xf32>
    %c0_9 = arith.constant 0 : index
    %c0_10 = arith.constant 0 : index
    %5 = vector.load %arg5[%c0_9, %c0_10] : memref<8x1xf32, #tpu.memory_space<vmem>>, vector<8x1xf32>
    %c0_11 = arith.constant 0 : index
    %c0_12 = arith.constant 0 : index
    %6 = vector.load %arg7[%c0_11, %c0_12] : memref<8x1xf32, #tpu.memory_space<vmem>>, vector<8x1xf32>
    %c0_13 = arith.constant 0 : index
    %c0_14 = arith.constant 0 : index
    %7 = vector.load %arg8[%c0_13, %c0_14] : memref<8x1xf32, #tpu.memory_space<vmem>>, vector<8x1xf32>
    %c0_15 = arith.constant 0 : index
    %c0_16 = arith.constant 0 : index
    %c0_17 = arith.constant 0 : index
    %8 = vector.load %arg0[%c0_15, %c0_16, %c0_17] : memref<2x8x128xf32, #tpu.memory_space<vmem>>, vector<1x8x128xf32>
    %9 = vector.shape_cast %8 : vector<1x8x128xf32> to vector<8x128xf32>
    %c1 = arith.constant 1 : index
    %c0_18 = arith.constant 0 : index
    %c0_19 = arith.constant 0 : index
    %10 = vector.load %arg0[%c1, %c0_18, %c0_19] : memref<2x8x128xf32, #tpu.memory_space<vmem>>, vector<1x8x128xf32>
    %11 = vector.shape_cast %10 : vector<1x8x128xf32> to vector<8x128xf32>
    %12 = tpu.concatenate %9, %11 in 1 : vector<8x128xf32>, vector<8x128xf32> -> vector<8x256xf32>
    %c1_i32 = arith.constant 1 : i32
    %13 = tpu.dynamic_rotate %12 by %c1_i32 dim 1 : vector<8x256xf32>, i32 -> vector<8x256xf32>
    %14 = vector.broadcast %0 : vector<1x256xf32> to vector<8x256xf32>
    %15 = arith.mulf %13, %14 : vector<8x256xf32>
    %c255_i32 = arith.constant 255 : i32
    %16 = tpu.dynamic_rotate %12 by %c255_i32 dim 1 : vector<8x256xf32>, i32 -> vector<8x256xf32>
    %17 = vector.broadcast %1 : vector<1x256xf32> to vector<8x256xf32>
    %18 = arith.mulf %16, %17 : vector<8x256xf32>
    %19 = tpu.concatenate %15, %12, %18 in 0 : vector<8x256xf32>, vector<8x256xf32>, vector<8x256xf32> -> vector<24x256xf32>
    %cst = arith.constant dense<0.000000e+00> : vector<8x256xf32>
    %20 = tpu.matmul %2, %19, %cst {dimension_numbers = #tpu.dot_dimension_numbers<[1], [0], [0], [1], [0, 0, 1, 1], [], []>} : vector<8x24xf32>, vector<24x256xf32>, vector<8x256xf32> -> vector<8x256xf32>
    %cst_20 = arith.constant dense<0.000000e+00> : vector<8xf32>
    %21 = vector.multi_reduction <add>, %20, %cst_20 [1] : vector<8x256xf32> to vector<8xf32>
    %22 = vector.shape_cast %21 : vector<8xf32> to vector<8x1xf32>
    %cst_21 = arith.constant 3.906250e-03 : f32
    %23 = vector.broadcast %cst_21 : f32 to vector<8x1xf32>
    %24 = arith.mulf %22, %23 : vector<8x1xf32>
    %25 = vector.broadcast %24 : vector<8x1xf32> to vector<8x256xf32>
    %26 = arith.subf %20, %25 : vector<8x256xf32>
    %27 = arith.mulf %26, %26 : vector<8x256xf32>
    %cst_22 = arith.constant dense<0.000000e+00> : vector<8xf32>
    %28 = vector.multi_reduction <add>, %27, %cst_22 [1] : vector<8x256xf32> to vector<8xf32>
    %29 = vector.shape_cast %28 : vector<8xf32> to vector<8x1xf32>
    %cst_23 = arith.constant 3.906250e-03 : f32
    %30 = vector.broadcast %cst_23 : f32 to vector<8x1xf32>
    %31 = arith.mulf %29, %30 : vector<8x1xf32>
    %cst_24 = arith.constant 9.99999974E-6 : f32
    %32 = vector.broadcast %cst_24 : f32 to vector<8x1xf32>
    %33 = arith.addf %31, %32 : vector<8x1xf32>
    %34 = math.rsqrt %33 : vector<8x1xf32>
    %35 = arith.mulf %4, %34 : vector<8x1xf32>
    %36 = vector.broadcast %35 : vector<8x1xf32> to vector<8x256xf32>
    %37 = arith.mulf %26, %36 : vector<8x256xf32>
    %38 = vector.broadcast %5 : vector<8x1xf32> to vector<8x256xf32>
    %39 = arith.addf %37, %38 : vector<8x256xf32>
    %cst_25 = arith.constant 0.000000e+00 : f32
    %40 = vector.broadcast %cst_25 : f32 to vector<8x256xf32>
    %41 = arith.maximumf %39, %40 : vector<8x256xf32>
    %c1_i32_26 = arith.constant 1 : i32
    %42 = tpu.dynamic_rotate %41 by %c1_i32_26 dim 1 : vector<8x256xf32>, i32 -> vector<8x256xf32>
    %43 = vector.broadcast %0 : vector<1x256xf32> to vector<8x256xf32>
    %44 = arith.mulf %42, %43 : vector<8x256xf32>
    %c255_i32_27 = arith.constant 255 : i32
    %45 = tpu.dynamic_rotate %41 by %c255_i32_27 dim 1 : vector<8x256xf32>, i32 -> vector<8x256xf32>
    %46 = vector.broadcast %1 : vector<1x256xf32> to vector<8x256xf32>
    %47 = arith.mulf %45, %46 : vector<8x256xf32>
    %48 = tpu.concatenate %44, %41, %47 in 0 : vector<8x256xf32>, vector<8x256xf32>, vector<8x256xf32> -> vector<24x256xf32>
    %cst_28 = arith.constant dense<0.000000e+00> : vector<8x256xf32>
    %49 = tpu.matmul %3, %48, %cst_28 {dimension_numbers = #tpu.dot_dimension_numbers<[1], [0], [0], [1], [0, 0, 1, 1], [], []>} : vector<8x24xf32>, vector<24x256xf32>, vector<8x256xf32> -> vector<8x256xf32>
    %cst_29 = arith.constant dense<0.000000e+00> : vector<8xf32>
    %50 = vector.multi_reduction <add>, %49, %cst_29 [1] : vector<8x256xf32> to vector<8xf32>
    %51 = vector.shape_cast %50 : vector<8xf32> to vector<8x1xf32>
    %cst_30 = arith.constant 3.906250e-03 : f32
    %52 = vector.broadcast %cst_30 : f32 to vector<8x1xf32>
    %53 = arith.mulf %51, %52 : vector<8x1xf32>
    %54 = vector.broadcast %53 : vector<8x1xf32> to vector<8x256xf32>
    %55 = arith.subf %49, %54 : vector<8x256xf32>
    %56 = arith.mulf %55, %55 : vector<8x256xf32>
    %cst_31 = arith.constant dense<0.000000e+00> : vector<8xf32>
    %57 = vector.multi_reduction <add>, %56, %cst_31 [1] : vector<8x256xf32> to vector<8xf32>
    %58 = vector.shape_cast %57 : vector<8xf32> to vector<8x1xf32>
    %cst_32 = arith.constant 3.906250e-03 : f32
    %59 = vector.broadcast %cst_32 : f32 to vector<8x1xf32>
    %60 = arith.mulf %58, %59 : vector<8x1xf32>
    %cst_33 = arith.constant 9.99999974E-6 : f32
    %61 = vector.broadcast %cst_33 : f32 to vector<8x1xf32>
    %62 = arith.addf %60, %61 : vector<8x1xf32>
    %63 = math.rsqrt %62 : vector<8x1xf32>
    %64 = arith.mulf %6, %63 : vector<8x1xf32>
    %65 = vector.broadcast %64 : vector<8x1xf32> to vector<8x256xf32>
    %66 = arith.mulf %55, %65 : vector<8x256xf32>
    %67 = vector.broadcast %7 : vector<8x1xf32> to vector<8x256xf32>
    %68 = arith.addf %66, %67 : vector<8x256xf32>
    %69 = arith.addf %68, %12 : vector<8x256xf32>
    %cst_34 = arith.constant 0.000000e+00 : f32
    %70 = vector.broadcast %cst_34 : f32 to vector<8x256xf32>
    %71 = arith.maximumf %69, %70 : vector<8x256xf32>
    %72 = vector.extract_strided_slice %71 {offsets = [0, 0], sizes = [8, 128], strides = [1, 1]} : vector<8x256xf32> to vector<8x128xf32>
    %c0_35 = arith.constant 0 : index
    %c0_36 = arith.constant 0 : index
    %c0_37 = arith.constant 0 : index
    %73 = vector.load %arg9[%c0_35, %c0_36, %c0_37] : memref<2x8x128xf32, #tpu.memory_space<vmem>>, vector<1x8x128xf32>
    %74 = vector.shape_cast %73 : vector<1x8x128xf32> to vector<8x128xf32>
    %75 = vector.shape_cast %72 : vector<8x128xf32> to vector<1x8x128xf32>
    tpu.vector_store %arg9[%c0_35, %c0_36, %c0_37], %75 {strides = array<i32>} : memref<2x8x128xf32, #tpu.memory_space<vmem>>, vector<1x8x128xf32>,
    %76 = vector.extract_strided_slice %71 {offsets = [0, 128], sizes = [8, 128], strides = [1, 1]} : vector<8x256xf32> to vector<8x128xf32>
    %c1_38 = arith.constant 1 : index
    %c0_39 = arith.constant 0 : index
    %c0_40 = arith.constant 0 : index
    %77 = vector.load %arg9[%c1_38, %c0_39, %c0_40] : memref<2x8x128xf32, #tpu.memory_space<vmem>>, vector<1x8x128xf32>
    %78 = vector.shape_cast %77 : vector<1x8x128xf32> to vector<8x128xf32>
    %79 = vector.shape_cast %76 : vector<8x128xf32> to vector<1x8x128xf32>
    tpu.vector_store %arg9[%c1_38, %c0_39, %c0_40], %79 {strides = array<i32>} : memref<2x8x128xf32, #tpu.memory_space<vmem>>, vector<1x8x128xf32>,
    return
  }
}

</mosaic_0001>

<llo_original>
// kernel: tpu_custom_call.1
$region0: #{tpu_custom_call.1}
  #allocation0 [shape = 'u32[]', space=smem, size = 0x4, offset = 0x4, fixed_abs, tag = 'smem constant byte address 0x4 - core index']
  #allocation1 [shape = 'u32[144,128]{1,0:T(1,128)}', space=vmem, size = 0x12000, scoped, tag = 'internal scratch']
  %s0 = inlined_call_operand.vmem [shape: f32[2,8,128], index: 0, kind: input, shape index: {}]
  %s1 = inlined_call_operand.vmem [shape: f32[1,256], index: 1, kind: input, shape index: {}]
  %s2 = inlined_call_operand.vmem [shape: f32[1,256], index: 2, kind: input, shape index: {}]
  %s3 = inlined_call_operand.vmem [shape: f32[8,24], index: 3, kind: input, shape index: {}]
  %s4 = inlined_call_operand.vmem [shape: f32[8,1], index: 4, kind: input, shape index: {}]
  %s5 = inlined_call_operand.vmem [shape: f32[8,1], index: 5, kind: input, shape index: {}]
  %s6 = inlined_call_operand.vmem [shape: f32[8,24], index: 6, kind: input, shape index: {}]
  %s7 = inlined_call_operand.vmem [shape: f32[8,1], index: 7, kind: input, shape index: {}]
  %s8 = inlined_call_operand.vmem [shape: f32[8,1], index: 8, kind: input, shape index: {}]
  %s9 = inlined_call_operand.hbm [shape: f32[2,8,128], index: 9, kind: output, shape index: {}]
  %s10 = sld [smem:[#allocation0]]
  $region46: #{tpu_custom_call.1} parent=0
    _
  %s12 = ssub.s32 1, %s10
  %s13 = scalar_select 0, %s12, %s10
  $region1: #{tpu_custom_call.1} parent=0
    #allocation2 [shape = 'u8[8192]{0}', space=vmem, size = 0x2000, scoped, tag = 'output window, operand 0, single buffered']
    #allocation3 [shape = 's32[1]{0}', space=sflag, size = 0x4, scoped, tag = 'scoped memory for tpu_custom_call.1']
    %14 = vsyncpa [#allocation3], 0
    // Predicated region
    $region2: #{tpu_custom_call.1} parent=1 // pred_check
      _
    $region3: #{tpu_custom_call.1} parent=1 // pred_check_branch
      %16 = sbr.rel (0) target = $region5
    $region4: #{tpu_custom_call.1} parent=1 // pred_region
      _
    $region5: #{tpu_custom_call.1} parent=1 // pred_fallthru
      _
    // Predicated region
    $region6: #{tpu_custom_call.1} parent=1 // pred_check
      _
    $region7: #{tpu_custom_call.1} parent=1 // pred_check_branch
      %18 = sbr.rel (0) target = $region9
    $region8: #{tpu_custom_call.1} parent=1 // pred_region
      _
    $region9: #{tpu_custom_call.1} parent=1 // pred_fallthru
      _
    // Predicated region
    $region10: #{tpu_custom_call.1} parent=1 // pred_check
      _
    $region11: #{tpu_custom_call.1} parent=1 // pred_check_branch
      %20 = sbr.rel (0) target = $region13
    $region12: #{tpu_custom_call.1} parent=1 // pred_region
      _
    $region13: #{tpu_custom_call.1} parent=1 // pred_fallthru
      _
    // Predicated region
    $region14: #{tpu_custom_call.1} parent=1 // pred_check
      _
    $region15: #{tpu_custom_call.1} parent=1 // pred_check_branch
      %22 = sbr.rel (0) target = $region17
    $region16: #{tpu_custom_call.1} parent=1 // pred_region
      _
    $region17: #{tpu_custom_call.1} parent=1 // pred_fallthru
      _
    // Predicated region
    $region18: #{tpu_custom_call.1} parent=1 // pred_check
      _
    $region19: #{tpu_custom_call.1} parent=1 // pred_check_branch
      %24 = sbr.rel (0) target = $region21
    $region20: #{tpu_custom_call.1} parent=1 // pred_region
      _
    $region21: #{tpu_custom_call.1} parent=1 // pred_fallthru
      _
    // Predicated region
    $region22: #{tpu_custom_call.1} parent=1 // pred_check
      _
    $region23: #{tpu_custom_call.1} parent=1 // pred_check_branch
      %26 = sbr.rel (0) target = $region25
    $region24: #{tpu_custom_call.1} parent=1 // pred_region
      _
    $region25: #{tpu_custom_call.1} parent=1 // pred_fallthru
      _
    // Predicated region
    $region26: #{tpu_custom_call.1} parent=1 // pred_check
      _
    $region27: #{tpu_custom_call.1} parent=1 // pred_check_branch
      %28 = sbr.rel (0) target = $region29
    $region28: #{tpu_custom_call.1} parent=1 // pred_region
      _
    $region29: #{tpu_custom_call.1} parent=1 // pred_fallthru
      _
    // Predicated region
    $region30: #{tpu_custom_call.1} parent=1 // pred_check
      _
    $region31: #{tpu_custom_call.1} parent=1 // pred_check_branch
      %30 = sbr.rel (0) target = $region33
    $region32: #{tpu_custom_call.1} parent=1 // pred_region
      _
    $region33: #{tpu_custom_call.1} parent=1 // pred_fallthru
      _
    // Predicated region
    $region34: #{tpu_custom_call.1} parent=1 // pred_check
      _
    $region35: #{tpu_custom_call.1} parent=1 // pred_check_branch
      %32 = sbr.rel (0) target = $region37
    $region36: #{tpu_custom_call.1} parent=1 // pred_region
      _
    $region37: #{tpu_custom_call.1} parent=1 // pred_fallthru
      _
    %v33 = vld [vmem:[%s1] sm:$0x3]
    %v34 = vld [vmem:[%s2] sm:$0x3]
    %v35 = vld [vmem:[%s3] sm:$0xff]
    %v36 = vld [vmem:[%s6] sm:$0xff]
    %v37 = vld [vmem:[%s4] sm:$0xff]
    %v38 = vld [vmem:[%s5] sm:$0xff]
    %v39 = vld [vmem:[%s7] sm:$0xff]
    %v40 = vld [vmem:[%s8] sm:$0xff]
    %v41 = vld [vmem:[%s0] sm:$0xff]
    %s42 = scalar_lea.vmem %s0, 8
    %v43 = vld [vmem:[%s42] sm:$0xff]
    %44 = vrot.lane.b32.xlu0 %v41, 1
    %v45 = vpop.permute.xlu0 %44
    %46 = vrot.lane.b32.xlu0 %v43, 1
    %v47 = vpop.permute.xlu0 %46
    %v48 = vlaneseq
    %v49 = vand.u32 %v48, 127
    %vm50 = vcmp.lt.s32.totalorder %v49, 1
    %v51 = vsel %vm50, %v45, %v47
    %v52 = vsel %vm50, %v47, %v45
    %v54 = vlaneseq
    %v55 = vshrl.u32 %v54, 7
    %v56 = vsub.s32 0, %v55
    %v57 = vrot.slane %v33, %v56
    %v58 = vlaneseq
    %v59 = vshrl.u32 %v58, 7
    %v60 = vsub.s32 1, %v59
    %v61 = vrot.slane %v33, %v60
    %v64 = vmul.f32 %v52, %v57
    %v65 = vmul.f32 %v51, %v61
    %66 = vrot.lane.b32.xlu0 %v41, 127
    %v67 = vpop.permute.xlu0 %66
    %68 = vrot.lane.b32.xlu0 %v43, 127
    %v69 = vpop.permute.xlu0 %68
    %vm70 = vcmp.lt.s32.totalorder %v49, 127
    %v71 = vsel %vm70, %v67, %v69
    %v72 = vsel %vm70, %v69, %v67
    %v74 = vlaneseq
    %v75 = vshrl.u32 %v74, 7
    %v76 = vsub.s32 0, %v75
    %v77 = vrot.slane %v34, %v76
    %v78 = vlaneseq
    %v79 = vshrl.u32 %v78, 7
    %v80 = vsub.s32 1, %v79
    %v81 = vrot.slane %v34, %v80
    %v84 = vmul.f32 %v71, %v77
    %v85 = vmul.f32 %v72, %v81
    %vm86 = vcmask 195584
    %v88 = vsel %vm86, %v35, 0
    %90 = vmatprep.subr.mxu0 %v65
    %91 = vmatpush1.msra.mxu0 %v64
    %92 = vmatprep.subr.mxu0 %v43
    %93 = vmatpush1.msra.mxu0 %v41
    %94 = vmatprep.subr.mxu0 %v85
    %95 = vmatpush1.msra.mxu0 %v84
    %96 = vmatprep.subr.mxu0 0.0
    %97 = vmatpush1.msra.mxu0 0.0
    %98 = vmatprep.subr.mxu0 0.0
    %99 = vmatpush1.msra.mxu0 0.0
    %100 = vmatprep.subr.mxu0 0.0
    %101 = vmatpush1.msra.mxu0 0.0
    %102 = vmatprep.subr.mxu0 0.0
    %103 = vmatpush1.msra.mxu0 0.0
    %104 = vmatprep.subr.mxu0 0.0
    %105 = vmatpush1.msra.mxu0 0.0
    %106 = vmatprep.subr.mxu0 0.0
    %107 = vmatpush1.msra.mxu0 0.0
    %108 = vmatprep.subr.mxu0 0.0
    %109 = vmatpush1.msra.mxu0 0.0
    %110 = vmatprep.subr.mxu0 0.0
    %111 = vmatpush1.msra.mxu0 0.0
    %112 = vmatprep.subr.mxu0 0.0
    %113 = vmatpush1.msra.mxu0 0.0
    %114 = vmatprep.subr.mxu0 0.0
    %115 = vmatpush1.msra.mxu0 0.0
    %116 = vmatprep.subr.mxu0 0.0
    %117 = vmatpush1.msra.mxu0 0.0
    %118 = vmatprep.subr.mxu0 0.0
    %119 = vmatpush1.msra.mxu0 0.0
    %120 = vmatprep.subr.mxu0 0.0
    %121 = vmatpush1.msra.mxu0 0.0
    %122 = vmatprep.subr.mxu0 0.0
    %123 = vmatpush1.msra.mxu0 0.0
    %124 = vmatprep.subr.mxu0 0.0
    %125 = vmatpush1.msra.mxu0 0.0
    %126 = vmatprep.subr.mxu0 0.0
    %127 = vmatpush1.msra.mxu0 0.0
    %128 = vmatprep.subr.mxu0 0.0
    %129 = vmatpush1.msra.mxu0 0.0
    %130 = vmatprep.subr.mxu0 0.0
    %131 = vmatpush1.msra.mxu0 0.0
    %132 = vmatprep.subr.mxu0 0.0
    %133 = vmatpush1.msra.mxu0 0.0
    %134 = vmatprep.subr.mxu0 0.0
    %135 = vmatpush1.msra.mxu0 0.0
    %136 = vmatprep.subr.mxu0 0.0
    %137 = vmatpush1.msra.mxu0 0.0
    %138 = vmatprep.subr.mxu0 0.0
    %139 = vmatpush1.msra.mxu0 0.0
    %140 = vmatprep.subr.mxu0 0.0
    %141 = vmatpush1.msra.mxu0 0.0
    %142 = vmatprep.subr.mxu0 0.0
    %143 = vmatpush1.msra.mxu0 0.0
    %144 = vmatprep.subr.mxu0 0.0
    %145 = vmatpush1.msra.mxu0 0.0
    %146 = vmatprep.subr.mxu0 0.0
    %147 = vmatpush1.msra.mxu0 0.0
    %148 = vmatprep.subr.mxu0 0.0
    %149 = vmatpush1.msra.mxu0 0.0
    %150 = vmatprep.subr.mxu0 0.0
    %151 = vmatpush1.msra.mxu0 0.0
    %152 = vmatprep.subr.mxu0 0.0
    %153 = vmatpush1.msra.mxu0 0.0
    %154 = vmatprep.mubr.f32.mxu0 0.0
    %155 = vmatmul.mubr.f32.gmra.mrb[0].mxu0 %v88
    %v156 = vpop.f32.mrb[0].mxu0
    %v157 = vadd.f32 0.0, %v156
    %v158 = vpop.f32.mrb[0].mxu0
    %v159 = vadd.f32 0.0, %v158
    %160 = vdwg.mxu0
    %v161 = vadd.f32 %v157, %v159
    %162 = vadd.xlane.f32.xlu0 %v161
    %v163 = vpop.xlane.xlu0 %162
    %v164 = vmul.f32 %v163, 0.00390625
    %v165 = vsub.f32 %v157, %v164
    %v166 = vsub.f32 %v159, %v164
    %v167 = vmul.f32 %v165, %v165
    %v168 = vmul.f32 %v166, %v166
    %v169 = vadd.f32 %v167, %v168
    %170 = vadd.xlane.f32.xlu0 %v169
    %v171 = vpop.xlane.xlu0 %170
    %v172 = vmul.f32 %v171, 0.00390625
    %v173 = vadd.f32 %v172, 1e-05
    %v174 = vrsqrt.pop %v173
    %v175 = vmul.f32 %v37, %v174
    %177 = vset.pattern.permute.xlu0 0
    %178 = vperm.xlu0 %177, %v175
    %v179 = vpop.permute.xlu0 %178
    %v181 = vmul.f32 %v165, %v179
    %v182 = vmul.f32 %v166, %v179
    %184 = vset.pattern.permute.xlu0 0
    %185 = vperm.xlu0 %184, %v38
    %v186 = vpop.permute.xlu0 %185
    %v188 = vadd.f32 %v181, %v186
    %v189 = vadd.f32 %v182, %v186
    %v190 = vmax.f32 %v188, 0.0
    %v191 = vmax.f32 %v189, 0.0
    %192 = vrot.lane.b32.xlu0 %v190, 1
    %v193 = vpop.permute.xlu0 %192
    %194 = vrot.lane.b32.xlu0 %v191, 1
    %v195 = vpop.permute.xlu0 %194
    %v196 = vsel %vm50, %v193, %v195
    %v197 = vsel %vm50, %v195, %v193
    %v198 = vmul.f32 %v197, %v57
    %v199 = vmul.f32 %v196, %v61
    %200 = vrot.lane.b32.xlu0 %v190, 127
    %v201 = vpop.permute.xlu0 %200
    %202 = vrot.lane.b32.xlu0 %v191, 127
    %v203 = vpop.permute.xlu0 %202
    %v204 = vsel %vm70, %v201, %v203
    %v205 = vsel %vm70, %v203, %v201
    %v206 = vmul.f32 %v204, %v77
    %v207 = vmul.f32 %v205, %v81
    %v209 = vsel %vm86, %v36, 0
    %211 = vmatprep.subr.mxu0 %v199
    %212 = vmatpush1.msra.mxu0 %v198
    %213 = vmatprep.subr.mxu0 %v191
    %214 = vmatpush1.msra.mxu0 %v190
    %215 = vmatprep.subr.mxu0 %v207
    %216 = vmatpush1.msra.mxu0 %v206
    %217 = vmatprep.subr.mxu0 0.0
    %218 = vmatpush1.msra.mxu0 0.0
    %219 = vmatprep.subr.mxu0 0.0
    %220 = vmatpush1.msra.mxu0 0.0
    %221 = vmatprep.subr.mxu0 0.0
    %222 = vmatpush1.msra.mxu0 0.0
    %223 = vmatprep.subr.mxu0 0.0
    %224 = vmatpush1.msra.mxu0 0.0
    %225 = vmatprep.subr.mxu0 0.0
    %226 = vmatpush1.msra.mxu0 0.0
    %227 = vmatprep.subr.mxu0 0.0
    %228 = vmatpush1.msra.mxu0 0.0
    %229 = vmatprep.subr.mxu0 0.0
    %230 = vmatpush1.msra.mxu0 0.0
    %231 = vmatprep.subr.mxu0 0.0
    %232 = vmatpush1.msra.mxu0 0.0
    %233 = vmatprep.subr.mxu0 0.0
    %234 = vmatpush1.msra.mxu0 0.0
    %235 = vmatprep.subr.mxu0 0.0
    %236 = vmatpush1.msra.mxu0 0.0
    %237 = vmatprep.subr.mxu0 0.0
    %238 = vmatpush1.msra.mxu0 0.0
    %239 = vmatprep.subr.mxu0 0.0
    %240 = vmatpush1.msra.mxu0 0.0
    %241 = vmatprep.subr.mxu0 0.0
    %242 = vmatpush1.msra.mxu0 0.0
    %243 = vmatprep.subr.mxu0 0.0
    %244 = vmatpush1.msra.mxu0 0.0
    %245 = vmatprep.subr.mxu0 0.0
    %246 = vmatpush1.msra.mxu0 0.0
    %247 = vmatprep.subr.mxu0 0.0
    %248 = vmatpush1.msra.mxu0 0.0
    %249 = vmatprep.subr.mxu0 0.0
    %250 = vmatpush1.msra.mxu0 0.0
    %251 = vmatprep.subr.mxu0 0.0
    %252 = vmatpush1.msra.mxu0 0.0
    %253 = vmatprep.subr.mxu0 0.0
    %254 = vmatpush1.msra.mxu0 0.0
    %255 = vmatprep.subr.mxu0 0.0
    %256 = vmatpush1.msra.mxu0 0.0
    %257 = vmatprep.subr.mxu0 0.0
    %258 = vmatpush1.msra.mxu0 0.0
    %259 = vmatprep.subr.mxu0 0.0
    %260 = vmatpush1.msra.mxu0 0.0
    %261 = vmatprep.subr.mxu0 0.0
    %262 = vmatpush1.msra.mxu0 0.0
    %263 = vmatprep.subr.mxu0 0.0
    %264 = vmatpush1.msra.mxu0 0.0
    %265 = vmatprep.subr.mxu0 0.0
    %266 = vmatpush1.msra.mxu0 0.0
    %267 = vmatprep.subr.mxu0 0.0
    %268 = vmatpush1.msra.mxu0 0.0
    %269 = vmatprep.subr.mxu0 0.0
    %270 = vmatpush1.msra.mxu0 0.0
    %271 = vmatprep.subr.mxu0 0.0
    %272 = vmatpush1.msra.mxu0 0.0
    %273 = vmatprep.subr.mxu0 0.0
    %274 = vmatpush1.msra.mxu0 0.0
    %275 = vmatprep.mubr.f32.mxu0 0.0
    %276 = vmatmul.mubr.f32.gmra.mrb[0].mxu0 %v209
    %v277 = vpop.f32.mrb[0].mxu0
    %v278 = vadd.f32 0.0, %v277
    %v279 = vpop.f32.mrb[0].mxu0
    %v280 = vadd.f32 0.0, %v279
    %281 = vdwg.mxu0
    %v282 = vadd.f32 %v278, %v280
    %283 = vadd.xlane.f32.xlu0 %v282
    %v284 = vpop.xlane.xlu0 %283
    %v285 = vmul.f32 %v284, 0.00390625
    %v286 = vsub.f32 %v278, %v285
    %v287 = vsub.f32 %v280, %v285
    %v288 = vmul.f32 %v286, %v286
    %v289 = vmul.f32 %v287, %v287
    %v290 = vadd.f32 %v288, %v289
    %291 = vadd.xlane.f32.xlu0 %v290
    %v292 = vpop.xlane.xlu0 %291
    %v293 = vmul.f32 %v292, 0.00390625
    %v294 = vadd.f32 %v293, 1e-05
    %v295 = vrsqrt.pop %v294
    %v296 = vmul.f32 %v39, %v295
    %298 = vset.pattern.permute.xlu0 0
    %299 = vperm.xlu0 %298, %v296
    %v300 = vpop.permute.xlu0 %299
    %v302 = vmul.f32 %v286, %v300
    %v303 = vmul.f32 %v287, %v300
    %305 = vset.pattern.permute.xlu0 0
    %306 = vperm.xlu0 %305, %v40
    %v307 = vpop.permute.xlu0 %306
    %v309 = vadd.f32 %v302, %v307
    %v310 = vadd.f32 %v303, %v307
    %v311 = vadd.f32 %v309, %v41
    %v312 = vadd.f32 %v310, %v43
    %v313 = vmax.f32 %v311, 0.0
    %v314 = vmax.f32 %v312, 0.0
    %315 = vst [vmem:[#allocation2] sm:$0xff] %v313
    %s316 = scalar_lea.vmem [#allocation2], 8
    %317 = vst [vmem:[%s316] sm:$0xff] %v314
    // Predicated region
    $region38: #{tpu_custom_call.1} parent=1 // pred_check
      _
    $region39: #{tpu_custom_call.1} parent=1 // pred_check_branch
      %319 = sbr.rel (0) target = $region41
    $region40: #{tpu_custom_call.1} parent=1 // pred_region
      %s321 = ssub.s32 256, 256
      %322 = vsyncadd [#allocation3], %s321
      %s323 = sshll.u32 [#allocation2], 4
      %s324 = int_to_ptr.vmem [resolvable:$true] %s323
      %329 = dma.vmem_to_hbm [thread:$0]  %s324, 256, %s9, [#allocation3], 128, 128, 8
    $region41: #{tpu_custom_call.1} parent=1 // pred_fallthru
      _
    // Predicated region
    $region42: #{tpu_custom_call.1} parent=1 // pred_check
      _
    $region43: #{tpu_custom_call.1} parent=1 // pred_check_branch
      %331 = sbr.rel (0) target = $region45
    $region44: #{tpu_custom_call.1} parent=1 // pred_region
      %332 = dma.done [#allocation3], 256
    $region45: #{tpu_custom_call.1} parent=1 // pred_fallthru
      _
    %333 = vsyncpa [#allocation3], 1

</llo_original>
